<compile_context>
chip_gen: v7x
topology: tpu7x:2x2x1
jax: 0.10.0
libtpu: 0.0.40
codegen_flags: <defaults>
</compile_context>

<pallas_src>
import jax
import jax.numpy as jnp
from jax.experimental import pallas as pl
from jax.experimental.pallas import tpu as pltpu


def _soft_dice_kernel(logits_ref, targets_ref, inter_out, union_out):
    """grid = (row_blocks [parallel], d_blocks [arbitrary / reduction])."""
    j = pl.program_id(1)

    @pl.when(j == 0)
    def _():
        inter_out[...] = jnp.zeros_like(inter_out)
        union_out[...] = jnp.zeros_like(union_out)

    # Upcast before sigmoid (v5e VPU/EUP have no bf16 path); f32 accumulation.
    probs = jax.nn.sigmoid(logits_ref[...].astype(jnp.float32))
    tgt = targets_ref[...].astype(jnp.float32)

    # One cross-lane reduce per step lands on the otherwise-idle XLU slot and
    # accumulates directly into the resident (row_block, 1) output blocks.
    inter_out[...] += jnp.sum(probs * tgt, axis=1, keepdims=True)
    union_out[...] += jnp.sum(probs + tgt, axis=1, keepdims=True)


def _vmem_budgets():
    """(input-block VMEM budget, compiler vmem limit) - generation aware."""
    try:
        cap = pltpu.get_tpu_info().vmem_capacity_bytes
    except Exception:           # conservative (v7x-sized) default if query fails
        cap = 64 << 20
    if cap >= (96 << 20):       # v5e / v6e: 128 MiB physical VMEM
        return 64 << 20, 96 << 20
    return 32 << 20, 48 << 20   # v7x: 64 MiB per TensorCore


def _round_up(x, m):
    return -(-x // m) * m


def _choose_fold(num, D):
    """Rows-per-sample fold that tiles D exactly into 128-multiples, or None."""
    exact = [f for f in (256, 128, 64, 32, 16, 8) if D % (f * 128) == 0]
    if not exact:
        return None
    # Prefer folds that make rows % 16 == 0 (2-way parallel row split stays
    # 8-sublane aligned for both v7x TensorCores).
    aligned = [f for f in exact if (num * f) % 16 == 0] or exact
    for f in aligned:                       # largest fold keeping Dr >= 1024
        if D // f >= 1024:
            return f
    return aligned[-1]                      # small D: keep rows modest


def _largest_tile_d(Dr, row_block, itemsizes, budget):
    """Largest multiple-of-128 divisor of Dr whose double-buffered input
    blocks fit the VMEM budget."""
    per_col = row_block * 2 * sum(itemsizes)      # 2 inputs x 2 pipeline bufs
    cap = max(128, (budget // max(per_col, 1)) // 128 * 128)
    if Dr <= cap:
        return Dr
    t = cap
    while t >= 128:
        if Dr % t == 0:
            return t
        t -= 128
    return 128


def soft_dice_loss(logits, targets):
    eps = 1e-09
    num = logits.shape[0]
    m1 = logits.reshape(num, -1)
    m2 = targets.reshape(num, -1)
    D = m1.shape[1]

    budget, vmem_limit = _vmem_budgets()
    itemsizes = (jnp.dtype(m1.dtype).itemsize, jnp.dtype(m2.dtype).itemsize)

    fold = _choose_fold(num, D)
    if fold is not None:
        # Exact fold: inputs are streamed once, no padded copy.
        rows = num * fold
        Dr = D // fold
        row_block = rows // 2 if rows % 16 == 0 else rows
        # TODO(synk): when rows % 16 != 0 the parallel axis has extent 1 and
        # one v7x TensorCore idles; a split-Dr partial-output grid would fix it.
        tile_d = _largest_tile_d(Dr, row_block, itemsizes, budget)
    else:
        # Ragged D: pad the flattened feature axis.  Logits pad with the most
        # negative finite value (sigmoid -> 0) and targets with 0, so padded
        # columns contribute nothing to either sum.
        # TODO(synk): an in-kernel iota mask on the final d-tile would avoid
        # this padded HBM copy for very large ragged inputs.
        fold = 16
        rows = num * fold
        row_block = rows // 2                         # rows % 16 == 0 here
        per_col = row_block * 2 * sum(itemsizes)
        cap = max(128, (budget // max(per_col, 1)) // 128 * 128)
        dr_needed = _round_up(-(-D // fold), 128)
        tile_d = min(cap, dr_needed)
        Dr = _round_up(-(-D // fold), tile_d)
        pad = fold * Dr - D
        if jnp.issubdtype(m1.dtype, jnp.floating):
            neg = jnp.finfo(m1.dtype).min
        else:
            neg = jnp.iinfo(m1.dtype).min
        m1 = jnp.pad(m1, ((0, 0), (0, pad)), constant_values=neg)
        m2 = jnp.pad(m2, ((0, 0), (0, pad)), constant_values=0)

    m1 = m1.reshape(rows, Dr)
    m2 = m2.reshape(rows, Dr)
    grid = (rows // row_block, Dr // tile_d)

    inter_rows, union_rows = pl.pallas_call(
        _soft_dice_kernel,
        out_shape=(jax.ShapeDtypeStruct((rows, 1), jnp.float32),
                   jax.ShapeDtypeStruct((rows, 1), jnp.float32)),
        grid_spec=pltpu.PrefetchScalarGridSpec(
            num_scalar_prefetch=0,
            grid=grid,
            in_specs=[
                pl.BlockSpec((row_block, tile_d), lambda i, j: (i, j)),
                pl.BlockSpec((row_block, tile_d), lambda i, j: (i, j)),
            ],
            out_specs=[
                pl.BlockSpec((row_block, 1), lambda i, j: (i, 0)),
                pl.BlockSpec((row_block, 1), lambda i, j: (i, 0)),
            ],
        ),
        compiler_params=pltpu.CompilerParams(
            dimension_semantics=("parallel", "arbitrary"),
            vmem_limit_bytes=vmem_limit,
        ),
    )(m1, m2)

    # Tiny per-sample combine + batch mean in plain JAX (matches the reference).
    inter = inter_rows.reshape(num, fold).sum(axis=1)
    union = union_rows.reshape(num, fold).sum(axis=1)
    score = (2.0 * inter + eps) / (union + eps)
    return jnp.mean(1.0 - score)


def _reference(logits, targets):
    eps = 1e-09
    num = logits.shape[0]
    probs = jax.nn.sigmoid(logits.astype(jnp.float32)).reshape(num, -1)
    tgt = targets.reshape(num, -1).astype(jnp.float32)
    intersection = jnp.sum(probs * tgt, axis=1)
    union = jnp.sum(probs, axis=1) + jnp.sum(tgt, axis=1)
    score = (2.0 * intersection + eps) / (union + eps)
    return jnp.mean(1.0 - score)


if __name__ == "__main__":
    key = jax.random.PRNGKey(0)
    k1, k2 = jax.random.split(key)

    # NCHW inputs consistent with the segmentation use-case.  (Binary targets
    # may also be passed as int8 / bf16 logits to shrink HBM traffic; the
    # kernel upcasts to f32 internally either way.)
    logits = jax.random.normal(k1, (2, 4, 16, 16), dtype=jnp.float32)
    targets = (jax.random.uniform(k2, (2, 4, 16, 16)) > 0.5).astype(jnp.float32)

    loss = soft_dice_loss(logits, targets)
    jax.block_until_ready(loss)

    ref = _reference(logits, targets)
    assert jnp.allclose(loss, ref, atol=1e-5, rtol=1e-5), (loss, ref)

    print("KERNEL_OK")
</pallas_src>

<mosaic_0001>
module attributes {stable_mosaic.version = 11 : i64} {
  func.func @_soft_dice_kernel(%arg0: i32, %arg1: i32, %arg2: memref<8x128xf32, #tpu.memory_space<vmem>>, %arg3: memref<8x128xf32, #tpu.memory_space<vmem>>, %arg4: memref<8x1xf32, #tpu.memory_space<vmem>>, %arg5: memref<8x1xf32, #tpu.memory_space<vmem>>) attributes {dimension_semantics = [#tpu.dimension_semantics<parallel>, #tpu.dimension_semantics<arbitrary>], iteration_bounds = array<i64: 2, 1>, scalar_prefetch = 0 : i64, scratch_operands = 0 : i64, tpu.core_type = #tpu.core_type<tc>, window_params = [{transform_indices = @transform_0, window_bounds = array<i64: 8, 128>}, {transform_indices = @transform_1, window_bounds = array<i64: 8, 128>}, {transform_indices = @transform_2, window_bounds = array<i64: 8, 1>}, {transform_indices = @transform_3, window_bounds = array<i64: 8, 1>}]} {
    %c0_i32 = arith.constant 0 : i32
    %0 = arith.cmpi eq, %arg1, %c0_i32 : i32
    %1 = arith.extui %0 : i1 to i32
    %c0_i32_0 = arith.constant 0 : i32
    %2 = arith.cmpi ne, %1, %c0_i32_0 : i32
    scf.if %2 {
      %cst_14 = arith.constant 0.000000e+00 : f32
      %22 = vector.broadcast %cst_14 : f32 to vector<8x1xf32>
      %c0_15 = arith.constant 0 : index
      %c0_16 = arith.constant 0 : index
      %23 = vector.load %arg4[%c0_15, %c0_16] : memref<8x1xf32, #tpu.memory_space<vmem>>, vector<8x1xf32>
      tpu.vector_store %arg4[%c0_15, %c0_16], %22 {strides = array<i32>} : memref<8x1xf32, #tpu.memory_space<vmem>>, vector<8x1xf32>,
      %cst_17 = arith.constant 0.000000e+00 : f32
      %24 = vector.broadcast %cst_17 : f32 to vector<8x1xf32>
      %c0_18 = arith.constant 0 : index
      %c0_19 = arith.constant 0 : index
      %25 = vector.load %arg5[%c0_18, %c0_19] : memref<8x1xf32, #tpu.memory_space<vmem>>, vector<8x1xf32>
      tpu.vector_store %arg5[%c0_18, %c0_19], %24 {strides = array<i32>} : memref<8x1xf32, #tpu.memory_space<vmem>>, vector<8x1xf32>,
    } else {
    }
    %c0 = arith.constant 0 : index
    %c0_1 = arith.constant 0 : index
    %3 = vector.load %arg2[%c0, %c0_1] : memref<8x128xf32, #tpu.memory_space<vmem>>, vector<8x128xf32>
    %4 = arith.negf %3 : vector<8x128xf32>
    %5 = math.exp %4 : vector<8x128xf32>
    %cst = arith.constant 1.000000e+00 : f32
    %6 = vector.broadcast %cst : f32 to vector<8x128xf32>
    %7 = arith.addf %6, %5 : vector<8x128xf32>
    %8 = arith.divf %6, %7 : vector<8x128xf32>
    %c0_2 = arith.constant 0 : index
    %c0_3 = arith.constant 0 : index
    %9 = vector.load %arg3[%c0_2, %c0_3] : memref<8x128xf32, #tpu.memory_space<vmem>>, vector<8x128xf32>
    %c0_4 = arith.constant 0 : index
    %c0_5 = arith.constant 0 : index
    %10 = vector.load %arg4[%c0_4, %c0_5] : memref<8x1xf32, #tpu.memory_space<vmem>>, vector<8x1xf32>
    %11 = arith.mulf %8, %9 : vector<8x128xf32>
    %cst_6 = arith.constant dense<0.000000e+00> : vector<8xf32>
    %12 = vector.multi_reduction <add>, %11, %cst_6 [1] : vector<8x128xf32> to vector<8xf32>
    %13 = vector.shape_cast %12 : vector<8xf32> to vector<8x1xf32>
    %14 = arith.addf %10, %13 : vector<8x1xf32>
    %c0_7 = arith.constant 0 : index
    %c0_8 = arith.constant 0 : index
    %15 = vector.load %arg4[%c0_7, %c0_8] : memref<8x1xf32, #tpu.memory_space<vmem>>, vector<8x1xf32>
    tpu.vector_store %arg4[%c0_7, %c0_8], %14 {strides = array<i32>} : memref<8x1xf32, #tpu.memory_space<vmem>>, vector<8x1xf32>,
    %c0_9 = arith.constant 0 : index
    %c0_10 = arith.constant 0 : index
    %16 = vector.load %arg5[%c0_9, %c0_10] : memref<8x1xf32, #tpu.memory_space<vmem>>, vector<8x1xf32>
    %17 = arith.addf %8, %9 : vector<8x128xf32>
    %cst_11 = arith.constant dense<0.000000e+00> : vector<8xf32>
    %18 = vector.multi_reduction <add>, %17, %cst_11 [1] : vector<8x128xf32> to vector<8xf32>
    %19 = vector.shape_cast %18 : vector<8xf32> to vector<8x1xf32>
    %20 = arith.addf %16, %19 : vector<8x1xf32>
    %c0_12 = arith.constant 0 : index
    %c0_13 = arith.constant 0 : index
    %21 = vector.load %arg5[%c0_12, %c0_13] : memref<8x1xf32, #tpu.memory_space<vmem>>, vector<8x1xf32>
    tpu.vector_store %arg5[%c0_12, %c0_13], %20 {strides = array<i32>} : memref<8x1xf32, #tpu.memory_space<vmem>>, vector<8x1xf32>,
    return
  }
  func.func @transform_0(%arg0: i32, %arg1: i32) -> (i32, i32) {
    %c0_i32 = arith.constant 0 : i32
    return %arg0, %arg1 : i32, i32
  }
  func.func @transform_1(%arg0: i32, %arg1: i32) -> (i32, i32) {
    %c0_i32 = arith.constant 0 : i32
    return %arg0, %arg1 : i32, i32
  }
  func.func @transform_2(%arg0: i32, %arg1: i32) -> (i32, i32) {
    %c0_i32 = arith.constant 0 : i32
    %c0_i32_0 = arith.constant 0 : i32
    return %arg0, %c0_i32 : i32, i32
  }
  func.func @transform_3(%arg0: i32, %arg1: i32) -> (i32, i32) {
    %c0_i32 = arith.constant 0 : i32
    %c0_i32_0 = arith.constant 0 : i32
    return %arg0, %c0_i32 : i32, i32
  }
}

</mosaic_0001>

<llo_original>
// kernel: tpu_custom_call.1
$region0: #{tpu_custom_call.1}
  #allocation0 [shape = 'u32[]', space=smem, size = 0x4, offset = 0x4, fixed_abs, tag = 'smem constant byte address 0x4 - core index']
  #allocation1 [shape = 'u32[144,128]{1,0:T(1,128)}', space=vmem, size = 0x12000, scoped, tag = 'internal scratch']
  %s0 = inlined_call_operand.hbm [shape: f32[16,128], index: 0, kind: input, shape index: {}]
  %s1 = inlined_call_operand.hbm [shape: f32[16,128], index: 1, kind: input, shape index: {}]
  %s2 = inlined_call_operand.vmem [shape: f32[16,1], index: 2, kind: output, shape index: {0}]
  %s3 = inlined_call_operand.vmem [shape: f32[16,1], index: 3, kind: output, shape index: {1}]
  %4 = xla_tuple %s2, %s3
  %s5 = sld [smem:[#allocation0]]
  $region61: #{tpu_custom_call.1} parent=0
    _
  %s7 = ssub.s32 1, %s5
  %s8 = scalar_select 0, %s7, %s5
  $region1: #{tpu_custom_call.1} parent=0
    #allocation2 [shape = 'u8[8192]{0}', space=vmem, size = 0x2000, scoped, tag = 'input window, operand 0']
    #allocation3 [shape = 's32[2]{0}', space=sflag, size = 0x8, scoped, tag = 'scoped memory for tpu_custom_call.1']
    #allocation4 [shape = 'u8[8192]{0}', space=vmem, size = 0x2000, scoped, tag = 'input window, operand 1']
    #allocation5 [shape = 's32[2]{0}', space=sflag, size = 0x8, scoped, tag = 'scoped memory for tpu_custom_call.1']
    %9 = vsyncpa [#allocation3], 0
    %s10 = scalar_lea.sflag [#allocation3], 1
    %11 = vsyncpa %s10, 0
    %12 = vsyncpa [#allocation5], 0
    %s13 = scalar_lea.sflag [#allocation5], 1
    %14 = vsyncpa %s13, 0
    loop: start=0, step=1, limit=4
    $region2: #{tpu_custom_call.1} parent=1 // loop_pre_header
      _
    $region3: #{tpu_custom_call.1} parent=1 // loop_header
      %s16 = sphi 0, %s20
      %p17 = scmp.ge.s32.totalorder %s16, 4
      %s23 = sphi 0, %s35
      %s24 = sphi 0, %s31
      %s25 = sphi 0, %s23
      %s26 = sphi 0, %s24
      %s27 = sphi 0, %s25
      %s28 = sphi 0, %s26
      %s40 = sphi 0, %s42
      %s43 = sphi 0, %s40
      %s44 = sphi 0, %s43
      %s60 = sphi 0, %s44
      %s68 = sphi 0, %s70
      %s71 = sphi 0, %s68
      %s72 = sphi 0, %s71
      %s88 = sphi 0, %s72
      %s94 = sphi 0, %s96
      %s97 = sphi 0, %s94
      %s98 = sphi 0, %s97
      %s114 = sphi 0, %s98
      %s120 = sphi 0, %s122
      %s123 = sphi 0, %s120
      %s124 = sphi 0, %s123
      %s140 = sphi 0, %s124
    $region4: #{tpu_custom_call.1} parent=1 // loop_header_branch
      %19 = sbr.rel (%p17) target = $region8
    $region5: #{tpu_custom_call.1} parent=1 // loop_body
      %s21 = ssub.s32 %s16, 1
      %s22 = ssub.s32 %s16, 2
      %s29 = sadd.s32 1, %s24
      %p30 = scmp.ge.s32.totalorder %s29, 1
      %s31 = scalar_select %p30, 0, %s29
      %s32 = sadd.s32 1, %s23
      %s33 = scalar_select %p30, %s32, %s23
      %p34 = scmp.ge.s32.totalorder %s33, 2
      %s35 = scalar_select %p34, 0, %s33
      %s36 = ssub.s32 %s23, %s35
      %s37 = ssub.s32 %s24, %s31
      %s38 = sor.u32 %s36, %s37
      %p39 = scmp.eq.s32.totalorder %s38, 0
      %s41 = sadd.s32 %s40, 1
      %s42 = scalar_select %p39, %s40, %s41
      %p45 = pneg %p39
      %p46 = scmp.eq.s32.totalorder %s16, 1
      %p47 = por %p45, %p46
      %p48 = scmp.ne.s32.totalorder %s40, %s43
      %p49 = scmp.eq.s32.totalorder %s16, 0
      %p50 = por %p48, %p49
      %p51 = scmp.ne.s32.totalorder %s40, %s43
      %p52 = scmp.eq.s32.totalorder %s21, 1
      %p53 = por %p51, %p52
      %p54 = scmp.ne.s32.totalorder %s43, %s44
      %p55 = scmp.eq.s32.totalorder %s21, 0
      %p56 = por %p54, %p55
      %p57 = scmp.ne.s32.totalorder %s43, %s44
      %p58 = scmp.eq.s32.totalorder %s22, 1
      %p59 = por %p57, %p58
      %p61 = scmp.ne.s32.totalorder %s44, %s60
      %p62 = scmp.eq.s32.totalorder %s22, 0
      %p63 = por %p61, %p62
      %s64 = ssub.s32 %s23, %s35
      %s65 = ssub.s32 %s24, %s31
      %s66 = sor.u32 %s64, %s65
      %p67 = scmp.eq.s32.totalorder %s66, 0
      %s69 = sadd.s32 %s68, 1
      %s70 = scalar_select %p67, %s68, %s69
      %p73 = pneg %p67
      %p74 = scmp.eq.s32.totalorder %s16, 1
      %p75 = por %p73, %p74
      %p76 = scmp.ne.s32.totalorder %s68, %s71
      %p77 = scmp.eq.s32.totalorder %s16, 0
      %p78 = por %p76, %p77
      %p79 = scmp.ne.s32.totalorder %s68, %s71
      %p80 = scmp.eq.s32.totalorder %s21, 1
      %p81 = por %p79, %p80
      %p82 = scmp.ne.s32.totalorder %s71, %s72
      %p83 = scmp.eq.s32.totalorder %s21, 0
      %p84 = por %p82, %p83
      %p85 = scmp.ne.s32.totalorder %s71, %s72
      %p86 = scmp.eq.s32.totalorder %s22, 1
      %p87 = por %p85, %p86
      %p89 = scmp.ne.s32.totalorder %s72, %s88
      %p90 = scmp.eq.s32.totalorder %s22, 0
      %p91 = por %p89, %p90
      %s92 = ssub.s32 %s23, %s35
      %p93 = scmp.eq.s32.totalorder %s92, 0
      %s95 = sadd.s32 %s94, 1
      %s96 = scalar_select %p93, %s94, %s95
      %p99 = pneg %p93
      %p100 = scmp.eq.s32.totalorder %s16, 1
      %p101 = por %p99, %p100
      %p102 = scmp.ne.s32.totalorder %s94, %s97
      %p103 = scmp.eq.s32.totalorder %s16, 0
      %p104 = por %p102, %p103
      %p105 = scmp.ne.s32.totalorder %s94, %s97
      %p106 = scmp.eq.s32.totalorder %s21, 1
      %p107 = por %p105, %p106
      %p108 = scmp.ne.s32.totalorder %s97, %s98
      %p109 = scmp.eq.s32.totalorder %s21, 0
      %p110 = por %p108, %p109
      %p111 = scmp.ne.s32.totalorder %s97, %s98
      %p112 = scmp.eq.s32.totalorder %s22, 1
      %p113 = por %p111, %p112
      %p115 = scmp.ne.s32.totalorder %s98, %s114
      %p116 = scmp.eq.s32.totalorder %s22, 0
      %p117 = por %p115, %p116
      %s118 = ssub.s32 %s23, %s35
      %p119 = scmp.eq.s32.totalorder %s118, 0
      %s121 = sadd.s32 %s120, 1
      %s122 = scalar_select %p119, %s120, %s121
      %p125 = pneg %p119
      %p126 = scmp.eq.s32.totalorder %s16, 1
      %p127 = por %p125, %p126
      %p128 = scmp.ne.s32.totalorder %s120, %s123
      %p129 = scmp.eq.s32.totalorder %s16, 0
      %p130 = por %p128, %p129
      %p131 = scmp.ne.s32.totalorder %s120, %s123
      %p132 = scmp.eq.s32.totalorder %s21, 1
      %p133 = por %p131, %p132
      %p134 = scmp.ne.s32.totalorder %s123, %s124
      %p135 = scmp.eq.s32.totalorder %s21, 0
      %p136 = por %p134, %p135
      %p137 = scmp.ne.s32.totalorder %s123, %s124
      %p138 = scmp.eq.s32.totalorder %s22, 1
      %p139 = por %p137, %p138
      %p141 = scmp.ne.s32.totalorder %s124, %s140
      %p142 = scmp.eq.s32.totalorder %s22, 0
      %p143 = por %p141, %p142
      %p144 = scmp.le.s32.totalorder 1, %s16
      %p145 = scmp.lt.s32.totalorder %s16, 3
      %p146 = pnand %p144, %p145
      %p147 = pneg %p146
      // Predicated region
      $region9: #{tpu_custom_call.1} parent=5 // pred_check
        _
      $region10: #{tpu_custom_call.1} parent=5 // pred_check_branch
        %149 = sbr.rel (%p146) target = $region12
      $region11: #{tpu_custom_call.1} parent=5 // pred_region
        %s150 = ssub.s32 %s16, 1
      $region12: #{tpu_custom_call.1} parent=5 // pred_fallthru
        _
      %p151 = scmp.lt.s32.totalorder %s16, 2
      // Predicated region
      $region13: #{tpu_custom_call.1} parent=5 // pred_check
        %p152 = pneg %p151
      $region14: #{tpu_custom_call.1} parent=5 // pred_check_branch
        %154 = sbr.rel (%p152) target = $region16
      $region15: #{tpu_custom_call.1} parent=5 // pred_region
        // Predicated region
        $region17: #{tpu_custom_call.1} parent=15 // pred_check
          %p155 = pneg %p50
        $region18: #{tpu_custom_call.1} parent=15 // pred_check_branch
          %157 = sbr.rel (%p155) target = $region20
        $region19: #{tpu_custom_call.1} parent=15 // pred_region
          %s158 = sand.u32 %s40, 1
          %s159 = scalar_lea.sflag [#allocation3], %s158
          %s160 = sand.u32 %s40, 1
          %s161 = smul.addr %s160, 8
          %s162 = scalar_lea.vmem [#allocation2], %s161
          %s164 = ssub.s32 128, 128
          %165 = vsyncadd %s159, %s164
          %s166 = sadd.s32 %s24, %s23
          %s167 = smul.addr %s166, 128
          %s168 = scalar_lea.hbm %s0, %s167
          %s170 = sshll.u32 %s162, 4
          %s171 = int_to_ptr.vmem [resolvable:$true] %s170
          %173 = dma.hbm_to_vmem [thread:$0]  %s168, 128, %s171, %s159
        $region20: #{tpu_custom_call.1} parent=15 // pred_fallthru
          _
        // Predicated region
        $region21: #{tpu_custom_call.1} parent=15 // pred_check
          %p174 = pneg %p78
        $region22: #{tpu_custom_call.1} parent=15 // pred_check_branch
          %176 = sbr.rel (%p174) target = $region24
        $region23: #{tpu_custom_call.1} parent=15 // pred_region
          %s177 = sand.u32 %s68, 1
          %s178 = scalar_lea.sflag [#allocation5], %s177
          %s179 = sand.u32 %s68, 1
          %s180 = smul.addr %s179, 8
          %s181 = scalar_lea.vmem [#allocation4], %s180
          %s183 = ssub.s32 128, 128
          %184 = vsyncadd %s178, %s183
          %s185 = sadd.s32 %s24, %s23
          %s186 = smul.addr %s185, 128
          %s187 = scalar_lea.hbm %s1, %s186
          %s189 = sshll.u32 %s181, 4
          %s190 = int_to_ptr.vmem [resolvable:$true] %s189
          %192 = dma.hbm_to_vmem [thread:$0]  %s187, 128, %s190, %s178
        $region24: #{tpu_custom_call.1} parent=15 // pred_fallthru
          _
      $region16: #{tpu_custom_call.1} parent=5 // pred_fallthru
        _
      %p193 = scmp.le.s32.totalorder 1, %s16
      %p194 = scmp.lt.s32.totalorder %s16, 3
      %p195 = pnand %p193, %p194
      %p196 = pneg %p195
      // Predicated region
      $region25: #{tpu_custom_call.1} parent=5 // pred_check
        _
      $region26: #{tpu_custom_call.1} parent=5 // pred_check_branch
        %198 = sbr.rel (%p195) target = $region28
      $region27: #{tpu_custom_call.1} parent=5 // pred_region
        %s199 = ssub.s32 %s16, 1
        %s200 = sand.u32 %s43, 1
        %s201 = scalar_lea.sflag [#allocation3], %s200
        %s202 = sand.u32 %s43, 1
        %s203 = smul.addr %s202, 8
        %s204 = scalar_lea.vmem [#allocation2], %s203
        // Predicated region
        $region29: #{tpu_custom_call.1} parent=27 // pred_check
          %p205 = pneg %p56
        $region30: #{tpu_custom_call.1} parent=27 // pred_check_branch
          %207 = sbr.rel (%p205) target = $region32
        $region31: #{tpu_custom_call.1} parent=27 // pred_region
          %208 = dma.done %s201, 128
        $region32: #{tpu_custom_call.1} parent=27 // pred_fallthru
          _
        %s209 = sand.u32 %s71, 1
        %s210 = scalar_lea.sflag [#allocation5], %s209
        %s211 = sand.u32 %s71, 1
        %s212 = smul.addr %s211, 8
        %s213 = scalar_lea.vmem [#allocation4], %s212
        // Predicated region
        $region33: #{tpu_custom_call.1} parent=27 // pred_check
          %p214 = pneg %p84
        $region34: #{tpu_custom_call.1} parent=27 // pred_check_branch
          %216 = sbr.rel (%p214) target = $region36
        $region35: #{tpu_custom_call.1} parent=27 // pred_region
          %217 = dma.done %s210, 128
        $region36: #{tpu_custom_call.1} parent=27 // pred_fallthru
          _
        %s218 = sand.u32 %s43, 1
        %s219 = scalar_lea.sflag [#allocation3], %s218
        %s220 = sand.u32 %s43, 1
        %s221 = smul.addr %s220, 8
        %s222 = scalar_lea.vmem [#allocation2], %s221
        %p223 = pneg %p56
        %p224 = pneg %p53
        %s225 = sand.u32 %s71, 1
        %s226 = scalar_lea.sflag [#allocation5], %s225
        %s227 = sand.u32 %s71, 1
        %s228 = smul.addr %s227, 8
        %s229 = scalar_lea.vmem [#allocation4], %s228
        %p230 = pneg %p84
        %p231 = pneg %p81
        %p232 = pneg %p110
        %p233 = pneg %p107
        %p234 = scmp.lt.s32.totalorder %s25, 1
        %s235 = scalar_select %p234, %s25, 1
        %s236 = smul.addr %s235, 8
        %s237 = scalar_lea.vmem %s2, %s236
        %p238 = pneg %p136
        %p239 = pneg %p133
        %p240 = scmp.lt.s32.totalorder %s25, 1
        %s241 = scalar_select %p240, %s25, 1
        %s242 = smul.addr %s241, 8
        %s243 = scalar_lea.vmem %s3, %s242
        %p244 = scmp.lt.s32.totalorder %s25, 1
        %s245 = scalar_select %p244, %s25, 1
        %s246 = smul.addr %s245, 8
        %s247 = scalar_lea.vmem %s2, %s246
        %p248 = scmp.lt.s32.totalorder %s25, 1
        %s249 = scalar_select %p248, %s25, 1
        %s250 = smul.addr %s249, 8
        %s251 = scalar_lea.vmem %s3, %s250
        %p252 = scmp.eq.s32.totalorder %s26, 0
        // Predicated region
        $region37: #{tpu_custom_call.1} parent=27 // pred_check
          %p253 = pneg %p252
        $region38: #{tpu_custom_call.1} parent=27 // pred_check_branch
          %255 = sbr.rel (%p253) target = $region40
        $region39: #{tpu_custom_call.1} parent=27 // pred_region
          %vm256 = vcmask 7168
          %257 = vst.msk [vmem:[%s247] sm:$0xff] %vm256, 0.0
          %258 = vst.msk [vmem:[%s251] sm:$0xff] %vm256, 0.0
        $region40: #{tpu_custom_call.1} parent=27 // pred_fallthru
          _
        %v259 = vld [vmem:[%s204] sm:$0xff]
        %v260 = vxor.u32 %v259, 2147483648
        %v261 = vmul.f32 %v260, 1.442695
        %v262 = vpow.pop %v261
        %v263 = vadd.f32 %v262, 1.0
        %v264 = vrcp.pop %v263
        %v265 = vmul.f32 1.0, %v264
        %v266 = vld [vmem:[%s213] sm:$0xff]
        %v267 = vld [vmem:[%s247] sm:$0xff]
        %v268 = vmul.f32 %v265, %v266
        %269 = vadd.xlane.f32.xlu0 %v268
        %v270 = vpop.xlane.xlu0 %269
        %v271 = vadd.f32 %v267, %v270
        %vm272 = vcmask 7168
        %273 = vst.msk [vmem:[%s247] sm:$0xff] %vm272, %v271
        %v274 = vld [vmem:[%s251] sm:$0xff]
        %v275 = vadd.f32 %v265, %v266
        %276 = vadd.xlane.f32.xlu0 %v275
        %v277 = vpop.xlane.xlu0 %276
        %v278 = vadd.f32 %v274, %v277
        %279 = vst.msk [vmem:[%s251] sm:$0xff] %vm272, %v278
        %p280 = scmp.lt.s32.totalorder %s25, 1
        %s281 = scalar_select %p280, %s25, 1
        %s282 = smul.addr %s281, 8
        %s283 = scalar_lea.vmem %s2, %s282
        %p284 = scmp.lt.s32.totalorder %s25, 1
        %s285 = scalar_select %p284, %s25, 1
        %s286 = smul.addr %s285, 8
        %s287 = scalar_lea.vmem %s3, %s286
        // Predicated region
        $region41: #{tpu_custom_call.1} parent=27 // pred_check
          %p288 = pneg %p107
        $region42: #{tpu_custom_call.1} parent=27 // pred_check_branch
          %290 = sbr.rel (%p288) target = $region44
        $region43: #{tpu_custom_call.1} parent=27 // pred_region
          _
        $region44: #{tpu_custom_call.1} parent=27 // pred_fallthru
          _
        // Predicated region
        $region45: #{tpu_custom_call.1} parent=27 // pred_check
          %p291 = pneg %p133
        $region46: #{tpu_custom_call.1} parent=27 // pred_check_branch
          %293 = sbr.rel (%p291) target = $region48
        $region47: #{tpu_custom_call.1} parent=27 // pred_region
          _
        $region48: #{tpu_custom_call.1} parent=27 // pred_fallthru
          _
      $region28: #{tpu_custom_call.1} parent=5 // pred_fallthru
        _
      %p294 = scmp.le.s32.totalorder 2, %s16
      // Predicated region
      $region49: #{tpu_custom_call.1} parent=5 // pred_check
        %p295 = pneg %p294
      $region50: #{tpu_custom_call.1} parent=5 // pred_check_branch
        %297 = sbr.rel (%p295) target = $region52
      $region51: #{tpu_custom_call.1} parent=5 // pred_region
        %s298 = ssub.s32 %s16, 2
        // Predicated region
        $region53: #{tpu_custom_call.1} parent=51 // pred_check
          %p299 = pneg %p113
        $region54: #{tpu_custom_call.1} parent=51 // pred_check_branch
          %301 = sbr.rel (%p299) target = $region56
        $region55: #{tpu_custom_call.1} parent=51 // pred_region
          %p302 = scmp.lt.s32.totalorder %s27, 1
          %s303 = scalar_select %p302, %s27, 1
          %s304 = smul.addr %s303, 8
          %s305 = scalar_lea.vmem %s2, %s304
        $region56: #{tpu_custom_call.1} parent=51 // pred_fallthru
          _
        // Predicated region
        $region57: #{tpu_custom_call.1} parent=51 // pred_check
          %p306 = pneg %p139
        $region58: #{tpu_custom_call.1} parent=51 // pred_check_branch
          %308 = sbr.rel (%p306) target = $region60
        $region59: #{tpu_custom_call.1} parent=51 // pred_region
          %p309 = scmp.lt.s32.totalorder %s27, 1
          %s310 = scalar_select %p309, %s27, 1
          %s311 = smul.addr %s310, 8
          %s312 = scalar_lea.vmem %s3, %s311
        $region60: #{tpu_custom_call.1} parent=51 // pred_fallthru
          _
      $region52: #{tpu_custom_call.1} parent=5 // pred_fallthru
        _
    $region6: #{tpu_custom_call.1} parent=1 // loop_footer
      %s20 = sadd.s32 1, %s16
    $region7: #{tpu_custom_call.1} parent=1 // loop_footer_branch
      %15 = sbr.rel target = $region3
    $region8: #{tpu_custom_call.1} parent=1 // loop_exit
      _
    %313 = vsyncpa [#allocation3], 1
    %s314 = scalar_lea.sflag [#allocation3], 1
    %315 = vsyncpa %s314, 1
    %316 = vsyncpa [#allocation5], 1
    %s317 = scalar_lea.sflag [#allocation5], 1
    %318 = vsyncpa %s317, 1

</llo_original>
